<compile_context>
chip_gen: v7x
topology: tpu7x:2x2x1
jax: 0.10.0
libtpu: 0.0.40
codegen_flags: <defaults>
</compile_context>

<pallas_src>
from functools import partial

import jax
import jax.numpy as jnp
from jax.experimental import pallas as pl
from jax.experimental.pallas import tpu as pltpu


_LANE_CAP = 8192         # max lane (last-dim) width of the 2-D slab
_MIN_RAGGED_LANES = 64   # below this, masked stores lose to the pad+slice fallback


def _cdiv(a, b):
    return -(-a // b)


def _round_up(a, b):
    return _cdiv(a, b) * b


def _zero_under_threshold_kernel(thr_ref, x_ref, o_ref):
    """out = where(x < thr, 0, x).  thr_ref: (1,) float32 scalar (SMEM prefetch)."""
    x = x_ref[...]
    thr = thr_ref[0]
    if jnp.issubdtype(x_ref.dtype, jnp.floating):
        # PyTorch weak-scalar promotion: compare in the tensor dtype.
        mask = x < thr.astype(x_ref.dtype)
    else:
        # Integer tensors: PyTorch compares against the *float* threshold
        # (casting 0.15 -> 0 would wrongly keep elements equal to 0).
        mask = x.astype(jnp.float32) < thr
    o_ref[...] = jnp.where(mask, jnp.zeros((), x_ref.dtype), x)   # one VPU select


def _generation_tuning():
    """Return (target_block_bytes, vmem_limit_bytes_or_None, two_tensorcores)."""
    block_bytes, vmem_limit, two_tc = 2 << 20, None, False      # safe default (v5e)
    try:
        kind = jax.devices()[0].device_kind.lower()
    except Exception:
        return block_bytes, vmem_limit, two_tc
    if "v7" in kind:
        # v7x: ~3.2 TB/s HBM, 2 TCs, 64 MiB VMEM -> big blocks + explicit limit
        # (4 double-buffered tiles = 32 MiB, above the 32 MiB scoped default).
        block_bytes, vmem_limit, two_tc = 8 << 20, 48 << 20, True
    elif "v6" in kind:
        # v6e: 4 MiB blocks (16 MiB of buffers) fit the 32 MiB scoped default.
        block_bytes, vmem_limit, two_tc = 4 << 20, None, False
    elif "v4" in kind or "v5p" in kind or kind.rstrip().endswith("v5"):
        # Megacore parts: 2 TCs, keep 2 MiB blocks (16 MiB scoped default).
        block_bytes, vmem_limit, two_tc = 2 << 20, None, True
    # v5e / unknown: keep the conservative defaults.
    return block_bytes, vmem_limit, two_tc


def _pick_lane_width(total, itemsize):
    """Largest lane width L dividing `total` so reshape -> (total//L, L) is a
    free bitcast.  Prefers multiples of 128 (unmasked stores) and keeps at
    least one sublane group of rows when possible."""
    sub = max(8, 32 // itemsize)           # 8 f32 / 16 bf16 / 32 int8 rows per vreg
    if total % 128 == 0:
        q = total // 128
        kmax = min(q, _LANE_CAP // 128)
        largest, chosen = None, None
        for k in range(kmax, 0, -1):
            if q % k:
                continue
            if largest is None:
                largest = k
            if q // k >= sub:              # rows >= one full sublane group
                chosen = k
                break
        return 128 * (chosen if chosen is not None else largest)
    # Ragged total: largest divisor <= _LANE_CAP (stores lane-masked, still 2-pass).
    best, d = 1, 1
    while d * d <= total:
        if total % d == 0:
            q = total // d
            if d <= _LANE_CAP:
                best = max(best, d)
            if q <= _LANE_CAP:
                best = max(best, q)
        d += 1
    return best


def _pick_row_tile(rows, lanes, itemsize, block_bytes, two_tc):
    """Row tile (multiple of the sublane packing, or == rows) and grid size."""
    sub = max(8, 32 // itemsize)
    bytes_per_row = max(1, lanes * itemsize)
    tr = max(sub, (block_bytes // bytes_per_row) // sub * sub)
    if rows <= tr:
        tr = rows                                   # single full-extent block
    grid = _cdiv(rows, tr)
    if two_tc:
        if grid == 1 and rows >= 2 * sub:
            tr = _round_up(_cdiv(rows, 2), sub)     # give each TensorCore work
            grid = _cdiv(rows, tr)
        elif grid > 1 and grid % 2 == 1:
            tr = _round_up(_cdiv(rows, grid + 1), sub)   # best-effort even grid
            grid = _cdiv(rows, tr)
    return tr, grid


def _run_2d(x2d, thr_arr, tr, grid, vmem_limit):
    rows, lanes = x2d.shape
    if vmem_limit is not None:
        cparams = pltpu.CompilerParams(dimension_semantics=("parallel",),
                                       vmem_limit_bytes=vmem_limit)
    else:
        cparams = pltpu.CompilerParams(dimension_semantics=("parallel",))
    return pl.pallas_call(
        _zero_under_threshold_kernel,
        out_shape=jax.ShapeDtypeStruct((rows, lanes), x2d.dtype),
        grid_spec=pltpu.PrefetchScalarGridSpec(
            num_scalar_prefetch=1,
            grid=(grid,),
            in_specs=[pl.BlockSpec((tr, lanes), lambda i, thr: (i, 0))],
            out_specs=pl.BlockSpec((tr, lanes), lambda i, thr: (i, 0)),
        ),
        compiler_params=cparams,
    )(thr_arr, x2d)


@partial(jax.jit, static_argnames=("min_pallas_bytes", "force_pallas"))
def zero_under_threshold(x, threshold=0.15, *,
                         min_pallas_bytes=64 << 10, force_pallas=False):
    """Apply ZeroUnderThreshold to an NCHW (or any-shape) tensor."""
    total = int(x.size)
    if total == 0:
        return x
    itemsize = jnp.dtype(x.dtype).itemsize

    # Tiny inputs: kernel launch + DMA setup dominates; let XLA fuse a select.
    if not force_pallas and total * itemsize < min_pallas_bytes:
        if jnp.issubdtype(x.dtype, jnp.floating):
            mask = x < jnp.asarray(threshold, x.dtype)
        else:
            mask = x.astype(jnp.float32) < jnp.asarray(threshold, jnp.float32)
        return jnp.where(mask, jnp.zeros((), x.dtype), x)

    block_bytes, vmem_limit, two_tc = _generation_tuning()
    thr_arr = jnp.asarray(threshold, dtype=jnp.float32).reshape(1)   # SMEM scalar

    lanes = _pick_lane_width(total, itemsize)
    if lanes >= _MIN_RAGGED_LANES:
        # Zero-copy path: lanes divides total, so both reshapes are bitcasts.
        rows = total // lanes
        tr, grid = _pick_row_tile(rows, lanes, itemsize, block_bytes, two_tc)
        out2d = _run_2d(x.reshape(rows, lanes), thr_arr, tr, grid, vmem_limit)
        return out2d.reshape(x.shape)

    # Pathological ragged size (no usable divisor): pad to a 128-lane slab.
    # TODO(synk): handle this tail with an in-kernel manual-DMA epilogue instead
    # of the pad + prefix-slice round trip (each costs one extra HBM pass).
    lanes = 128
    rows = _cdiv(total, lanes)
    xf = jnp.pad(x.reshape(-1), (0, rows * lanes - total))
    tr, grid = _pick_row_tile(rows, lanes, itemsize, block_bytes, two_tc)
    out2d = _run_2d(xf.reshape(rows, lanes), thr_arr, tr, grid, vmem_limit)
    return out2d.reshape(-1)[:total].reshape(x.shape)


if __name__ == "__main__":
    threshold = 0.15
    key = jax.random.PRNGKey(0)
    k1, k2, k3, k4, k5 = jax.random.split(key, 5)

    def _ref(x):
        if jnp.issubdtype(x.dtype, jnp.floating):
            mask = x < jnp.asarray(threshold, x.dtype)
        else:
            mask = x.astype(jnp.float32) < jnp.asarray(threshold, jnp.float32)
        return jnp.where(mask, jnp.zeros((), x.dtype), x)

    # 1) small NCHW input consistent with the module's usage; force the Pallas
    #    path so the kernel itself is exercised (aligned zero-copy path).
    x1 = jax.random.normal(k1, (2, 4, 16, 16), dtype=jnp.float32)
    out1 = jax.block_until_ready(zero_under_threshold(x1, threshold, force_pallas=True))
    assert out1.shape == x1.shape and out1.dtype == x1.dtype
    assert bool(jnp.array_equal(out1, _ref(x1)))

    # 2) larger input that takes the Pallas path by default (lane-dense slab).
    x2 = jax.random.normal(k2, (2, 8, 64, 128), dtype=jnp.float32)
    out2 = jax.block_until_ready(zero_under_threshold(x2, threshold))
    assert out2.shape == x2.shape and out2.dtype == x2.dtype
    assert bool(jnp.array_equal(out2, _ref(x2)))

    # 3) awkward spatial size (total = 1176, not a multiple of 128): exercised
    #    via the zero-copy ragged-divisor path (no pad, no slice).
    x3 = jax.random.normal(k3, (2, 3, 14, 14), dtype=jnp.float32)
    out3 = jax.block_until_ready(zero_under_threshold(x3, threshold, force_pallas=True))
    assert out3.shape == x3.shape and out3.dtype == x3.dtype
    assert bool(jnp.array_equal(out3, _ref(x3)))

    # 4) bf16: threshold is compared in the tensor dtype (weak-scalar promotion).
    x4 = jax.random.normal(k4, (2, 4, 16, 8), dtype=jnp.bfloat16)
    out4 = jax.block_until_ready(zero_under_threshold(x4, threshold, force_pallas=True))
    assert out4.shape == x4.shape and out4.dtype == x4.dtype
    assert bool(jnp.array_equal(out4, _ref(x4)))

    # 5) int32: elements < 0.15 (i.e. <= 0) are zeroed, matching PyTorch's
    #    float-promoted comparison.
    x5 = jax.random.randint(k5, (2, 3, 8, 16), -3, 4, dtype=jnp.int32)
    out5 = jax.block_until_ready(zero_under_threshold(x5, threshold, force_pallas=True))
    assert out5.shape == x5.shape and out5.dtype == x5.dtype
    assert bool(jnp.array_equal(out5, _ref(x5)))

    print("KERNEL_OK")
</pallas_src>

<mosaic_0001>
module attributes {stable_mosaic.version = 11 : i64} {
  func.func @_zero_under_threshold_kernel(%arg0: i32, %arg1: memref<1xf32, #tpu.memory_space<smem>>, %arg2: memref<8x256xf32, #tpu.memory_space<vmem>>, %arg3: memref<8x256xf32, #tpu.memory_space<vmem>>) attributes {dimension_semantics = [#tpu.dimension_semantics<parallel>], iteration_bounds = array<i64: 1>, scalar_prefetch = 1 : i64, scratch_operands = 0 : i64, tpu.core_type = #tpu.core_type<tc>, window_params = [{transform_indices = @transform_0, window_bounds = array<i64: 8, 256>}, {transform_indices = @transform_1, window_bounds = array<i64: 8, 256>}]} {
    %c0 = arith.constant 0 : index
    %c0_0 = arith.constant 0 : index
    %0 = vector.load %arg2[%c0, %c0_0] : memref<8x256xf32, #tpu.memory_space<vmem>>, vector<8x256xf32>
    %c0_1 = arith.constant 0 : index
    %1 = memref.load %arg1[%c0_1] : memref<1xf32, #tpu.memory_space<smem>>
    %2 = vector.broadcast %1 : f32 to vector<8x256xf32>
    %3 = arith.cmpf olt, %0, %2 : vector<8x256xf32>
    %cst = arith.constant 0.000000e+00 : f32
    %4 = vector.broadcast %cst : f32 to vector<8x256xf32>
    %5 = arith.select %3, %4, %0 : vector<8x256xi1>, vector<8x256xf32>
    %c0_2 = arith.constant 0 : index
    %c0_3 = arith.constant 0 : index
    %6 = vector.load %arg3[%c0_2, %c0_3] : memref<8x256xf32, #tpu.memory_space<vmem>>, vector<8x256xf32>
    tpu.vector_store %arg3[%c0_2, %c0_3], %5 {strides = array<i32>} : memref<8x256xf32, #tpu.memory_space<vmem>>, vector<8x256xf32>,
    return
  }
  func.func @transform_0(%arg0: i32, %arg1: memref<1xf32, #tpu.memory_space<smem>>) -> (i32, i32) {
    %c0_i32 = arith.constant 0 : i32
    %c0_i32_0 = arith.constant 0 : i32
    return %arg0, %c0_i32 : i32, i32
  }
  func.func @transform_1(%arg0: i32, %arg1: memref<1xf32, #tpu.memory_space<smem>>) -> (i32, i32) {
    %c0_i32 = arith.constant 0 : i32
    %c0_i32_0 = arith.constant 0 : i32
    return %arg0, %c0_i32 : i32, i32
  }
}

</mosaic_0001>

<llo_original>
// kernel: zero_under_threshold.1
$region0: #{zero_under_threshold.1}
  #allocation0 [shape = 'u32[]', space=smem, size = 0x4, offset = 0x4, fixed_abs, tag = 'smem constant byte address 0x4 - core index']
  #allocation1 [shape = 'u32[144,128]{1,0:T(1,128)}', space=vmem, size = 0x12000, scoped, tag = 'internal scratch']
  #allocation2 [shape = 's32[1]{0}', space=sflag, size = 0x4, scoped, tag = 'scoped memory for zero_under_threshold.1']
  #allocation3 [shape = 'f32[1]{0:T(128)S(6)}', space=smem, size = 0x200, scoped, tag = 'prefetched SMEM operand 0']
  %s0 = inlined_call_operand.<no memory space> [shape: f32[1], index: 0, kind: input, shape index: {}]
  %s1 = inlined_call_operand.vmem [shape: f32[8,256], index: 1, kind: input, shape index: {}]
  %s2 = inlined_call_operand.vmem [shape: f32[8,256], index: 2, kind: output, shape index: {}]
  %s3 = sld [smem:[#allocation0]]
  $region14: #{zero_under_threshold.1} parent=0
    _
  %s5 = ssub.s32 1, %s3
  %s6 = scalar_select 0, %s5, %s3
  %7 = sst [smem:[#allocation3]] %s0
  // Predicated region
  $region2: #{zero_under_threshold.1} parent=0 // pred_check
    _
  $region3: #{zero_under_threshold.1} parent=0 // pred_check_branch
    %9 = sbr.rel (0) target = $region5
  $region4: #{zero_under_threshold.1} parent=0 // pred_region
    _
  $region5: #{zero_under_threshold.1} parent=0 // pred_fallthru
    _
  %v10 = vld [vmem:[%s1] sm:$0xff]
  %v11 = vld [vmem:[%s1 + $0x8] sm:$0xff]
  %s12 = sld [smem:[#allocation3]]
  %v13 = vstv %s12
  %vm14 = vcmp.lt.f32.partialorder %v10, %v13
  %vm15 = vcmp.lt.f32.partialorder %v11, %v13
  %v16 = vsel %vm14, 0.0, %v10
  %v17 = vsel %vm15, 0.0, %v11
  %18 = vst [vmem:[%s2] sm:$0xff] %v16
  %19 = vst [vmem:[%s2 + $0x8] sm:$0xff] %v17
  // Predicated region
  $region6: #{zero_under_threshold.1} parent=0 // pred_check
    _
  $region7: #{zero_under_threshold.1} parent=0 // pred_check_branch
    %21 = sbr.rel (0) target = $region9
  $region8: #{zero_under_threshold.1} parent=0 // pred_region
    _
  $region9: #{zero_under_threshold.1} parent=0 // pred_fallthru
    _
  // Predicated region
  $region10: #{zero_under_threshold.1} parent=0 // pred_check
    _
  $region11: #{zero_under_threshold.1} parent=0 // pred_check_branch
    %23 = sbr.rel (0) target = $region13
  $region12: #{zero_under_threshold.1} parent=0 // pred_region
    _
  $region13: #{zero_under_threshold.1} parent=0 // pred_fallthru
    _

</llo_original>
